<compile_context>
chip_gen: v5e
topology: v5e:2x2
jax: 0.10.0
libtpu: 0.0.40
codegen_flags: <defaults>
</compile_context>

<pallas_src>
import jax
import jax.numpy as jnp
from jax import lax
from jax.experimental import pallas as pl
from jax.experimental.pallas import tpu as pltpu

H_MAX = 0.1  # matches `h_max = 0.1` in the PyTorch source


# ----------------------------------------------------------------------------
# Pallas kernel: single invocation; time loop and RK4 sub-step loop both live
# inside the kernel. ODE state is carried as a loop value (vregs).
# ----------------------------------------------------------------------------
def _neural_ode_kernel(n_ref,                      # SMEM (time_len-1,) i32: sub-steps per interval
                       h_ref,                      # SMEM (time_len-1,) f32: sub-step size h
                       h2_ref,                     # SMEM (time_len-1,) f32: h/2
                       h6_ref,                     # SMEM (time_len-1,) f32: h/6
                       z0_ref,                     # VMEM (bs, lat)
                       w1_ref, b1_ref,             # (lat, hid), (1, hid)
                       w2_ref, b2_ref,             # (hid, lat), (1, lat)
                       w3r_ref, b3_ref,            # (lat, lat) = w3 + I, (1, lat)
                       out_ref):                   # VMEM (time_len, bs, lat)
    time_len = out_ref.shape[0]
    bs = out_ref.shape[1]
    lat = out_ref.shape[2]

    # --- hoist constants once: weight loads + bias broadcasts stay in vregs ---
    w1 = w1_ref[...]
    w2 = w2_ref[...]
    w3r = w3r_ref[...]                                            # residual folded in
    b1 = jnp.broadcast_to(b1_ref[...], (bs, w1.shape[1]))
    b2 = jnp.broadcast_to(b2_ref[...], (bs, w2.shape[1]))
    b3 = jnp.broadcast_to(b3_ref[...], (bs, w3r.shape[1]))

    def func(z):
        # NNODEF.forward, time_invariant=True
        x = jnp.dot(z, w1, preferred_element_type=jnp.float32) + b1
        x = jnp.maximum(x, 0.0)                                   # nn.ReLU
        y = jnp.dot(x, w2, preferred_element_type=jnp.float32) + b2
        # h = -logsigmoid(y) = softplus(-y), numerically stable form
        hact = jnp.maximum(-y, 0.0) + jnp.log(1.0 + jnp.exp(-jnp.abs(y)))
        # lin3(h) + h  ==  h @ (w3 + I) + b3  (residual pre-folded into w3r)
        return jnp.dot(hact, w3r, preferred_element_type=jnp.float32) + b3

    z = z0_ref[...].astype(jnp.float32)
    out_ref[0] = z.astype(out_ref.dtype)

    def time_step(i, z):
        n = n_ref[i - 1]
        # Splat per-interval step scalars into vregs ONCE (not per sub-step /
        # per use): JAX does not CSE broadcast_in_dim.
        h_b = jnp.broadcast_to(h_ref[i - 1], (bs, lat))
        h2_b = jnp.broadcast_to(h2_ref[i - 1], (bs, lat))
        h6_b = jnp.broadcast_to(h6_ref[i - 1], (bs, lat))

        def rk4_substep(_, zz):
            k1 = func(zz)
            k2 = func(zz + h2_b * k1)
            k3 = func(zz + h2_b * k2)
            k4 = func(zz + h_b * k3)
            return zz + h6_b * (k1 + 2.0 * k2 + 2.0 * k3 + k4)

        z = lax.fori_loop(0, n, rk4_substep, z)
        out_ref[i] = z.astype(out_ref.dtype)
        return z

    lax.fori_loop(1, time_len, time_step, z)


# ----------------------------------------------------------------------------
# Wrapper
# ----------------------------------------------------------------------------
@jax.jit
def neural_ode_decoder_forward(z0, t, w1, b1, w2, b2, w3, b3):
    """z0: (bs, latent) f32; t: (time_len, bs, 1) f32 -> (time_len, bs, latent).

    Note: like the PyTorch solver (which uses t[i_t, 0, :]), time values are
    assumed identical across the batch; only t[:, 0, 0] is consumed.
    """
    bs, lat = z0.shape
    time_len = t.shape[0]
    z0 = z0.astype(jnp.float32)

    if time_len == 1:
        return z0[None]

    # Precompute per-interval sub-step counts / sizes (kept off the serial path).
    t_flat = t[:, 0, 0].astype(jnp.float32)
    dt = t_flat[1:] - t_flat[:-1]                                   # (time_len-1,)
    n_steps = jnp.maximum(jnp.ceil(jnp.abs(dt) / H_MAX).astype(jnp.int32), 1)
    h_sub = dt / n_steps.astype(jnp.float32)
    h_half = 0.5 * h_sub
    h_sixth = h_sub * (1.0 / 6.0)

    # Fold the residual connection into lin3: lin3(h) + h == h @ (w3 + I) + b3.
    w3_res = w3.astype(jnp.float32) + jnp.eye(lat, dtype=jnp.float32)

    smem = pl.BlockSpec(memory_space=pltpu.MemorySpace.SMEM)
    vmem = pl.BlockSpec(memory_space=pltpu.MemorySpace.VMEM)

    return pl.pallas_call(
        _neural_ode_kernel,
        out_shape=jax.ShapeDtypeStruct((time_len, bs, lat), jnp.float32),
        in_specs=[smem, smem, smem, smem,
                  vmem, vmem, vmem, vmem, vmem, vmem, vmem],
        out_specs=vmem,
    )(n_steps, h_sub, h_half, h_sixth, z0,
      w1.astype(jnp.float32), b1.astype(jnp.float32),
      w2.astype(jnp.float32), b2.astype(jnp.float32),
      w3_res, b3.astype(jnp.float32))


# ----------------------------------------------------------------------------
# Pure-JAX / numpy reference (correctness check only)
# ----------------------------------------------------------------------------
def _ref_forward(z0, t, w1, b1, w2, b2, w3, b3):
    import numpy as np

    def func(z):
        x = jnp.maximum(z @ w1 + b1, 0.0)
        y = x @ w2 + b2
        h = jnp.maximum(-y, 0.0) + jnp.log(1.0 + jnp.exp(-jnp.abs(y)))
        return h @ w3 + b3 + h

    ts = np.asarray(t[:, 0, 0])
    z = z0
    zs = [z0]
    for i in range(1, ts.shape[0]):
        dt = float(ts[i] - ts[i - 1])
        n = max(int(np.ceil(abs(dt) / H_MAX)), 1)
        h = dt / n
        for _ in range(n):
            k1 = func(z)
            k2 = func(z + 0.5 * h * k1)
            k3 = func(z + 0.5 * h * k2)
            k4 = func(z + h * k3)
            z = z + (h / 6.0) * (k1 + 2.0 * k2 + 2.0 * k3 + k4)
        zs.append(z)
    return jnp.stack(zs, axis=0)


# ----------------------------------------------------------------------------
# Demo
# ----------------------------------------------------------------------------
if __name__ == "__main__":
    bs = 8
    latent_dim = 16
    hidden_dim = 32
    output_dim = 24        # stored by the module but unused in forward
    time_len = 5

    key = jax.random.PRNGKey(0)
    k_z, k1, k2, k3, k4, k5, k6 = jax.random.split(key, 7)

    # PyTorch-style Linear init: U(-1/sqrt(fan_in), 1/sqrt(fan_in));
    # weights stored pre-transposed as (in_features, out_features).
    def lin_init(kw, kb, fan_in, fan_out):
        bound = 1.0 / jnp.sqrt(jnp.float32(fan_in))
        w = jax.random.uniform(kw, (fan_in, fan_out), jnp.float32, -bound, bound)
        b = jax.random.uniform(kb, (1, fan_out), jnp.float32, -bound, bound)
        return w, b

    w1, b1 = lin_init(k1, k2, latent_dim, hidden_dim)   # NNODEF.lin1 (time_invariant)
    w2, b2 = lin_init(k3, k4, hidden_dim, latent_dim)   # NNODEF.lin2
    w3, b3 = lin_init(k5, k6, latent_dim, latent_dim)   # NNODEF.lin3

    z0 = jax.random.normal(k_z, (bs, latent_dim), jnp.float32)
    t = jnp.broadcast_to(
        jnp.linspace(0.0, 1.0, time_len, dtype=jnp.float32)[:, None, None],
        (time_len, bs, 1),
    )

    xs = neural_ode_decoder_forward(z0, t, w1, b1, w2, b2, w3, b3)
    xs = jax.block_until_ready(xs)

    xs_ref = _ref_forward(z0, t, w1, b1, w2, b2, w3, b3)
    assert xs.shape == (time_len, bs, latent_dim)
    assert jnp.max(jnp.abs(xs - xs_ref)) < 1e-3, "mismatch vs pure-JAX reference"

    print("KERNEL_OK")
</pallas_src>

<mosaic_0001>
module attributes {stable_mosaic.version = 11 : i64} {
  func.func @_neural_ode_kernel(%arg0: memref<4xi32, #tpu.memory_space<smem>>, %arg1: memref<4xf32, #tpu.memory_space<smem>>, %arg2: memref<4xf32, #tpu.memory_space<smem>>, %arg3: memref<4xf32, #tpu.memory_space<smem>>, %arg4: memref<8x16xf32, #tpu.memory_space<vmem>>, %arg5: memref<16x32xf32, #tpu.memory_space<vmem>>, %arg6: memref<1x32xf32, #tpu.memory_space<vmem>>, %arg7: memref<32x16xf32, #tpu.memory_space<vmem>>, %arg8: memref<1x16xf32, #tpu.memory_space<vmem>>, %arg9: memref<16x16xf32, #tpu.memory_space<vmem>>, %arg10: memref<1x16xf32, #tpu.memory_space<vmem>>, %arg11: memref<5x8x16xf32, #tpu.memory_space<vmem>>) attributes {dimension_semantics = [], scalar_prefetch = 0 : i64, scratch_operands = 0 : i64, tpu.core_type = #tpu.core_type<tc>} {
    %c0 = arith.constant 0 : index
    %c0_0 = arith.constant 0 : index
    %0 = vector.load %arg5[%c0, %c0_0] : memref<16x32xf32, #tpu.memory_space<vmem>>, vector<16x32xf32>
    %c0_1 = arith.constant 0 : index
    %c0_2 = arith.constant 0 : index
    %1 = vector.load %arg7[%c0_1, %c0_2] : memref<32x16xf32, #tpu.memory_space<vmem>>, vector<32x16xf32>
    %c0_3 = arith.constant 0 : index
    %c0_4 = arith.constant 0 : index
    %2 = vector.load %arg9[%c0_3, %c0_4] : memref<16x16xf32, #tpu.memory_space<vmem>>, vector<16x16xf32>
    %c0_5 = arith.constant 0 : index
    %c0_6 = arith.constant 0 : index
    %3 = vector.load %arg6[%c0_5, %c0_6] : memref<1x32xf32, #tpu.memory_space<vmem>>, vector<1x32xf32>
    %4 = vector.shape_cast %3 : vector<1x32xf32> to vector<1x32xf32>
    %5 = vector.broadcast %4 : vector<1x32xf32> to vector<8x32xf32>
    %c0_7 = arith.constant 0 : index
    %c0_8 = arith.constant 0 : index
    %6 = vector.load %arg8[%c0_7, %c0_8] : memref<1x16xf32, #tpu.memory_space<vmem>>, vector<1x16xf32>
    %7 = vector.shape_cast %6 : vector<1x16xf32> to vector<1x16xf32>
    %8 = vector.broadcast %7 : vector<1x16xf32> to vector<8x16xf32>
    %c0_9 = arith.constant 0 : index
    %c0_10 = arith.constant 0 : index
    %9 = vector.load %arg10[%c0_9, %c0_10] : memref<1x16xf32, #tpu.memory_space<vmem>>, vector<1x16xf32>
    %10 = vector.shape_cast %9 : vector<1x16xf32> to vector<1x16xf32>
    %11 = vector.broadcast %10 : vector<1x16xf32> to vector<8x16xf32>
    %c0_11 = arith.constant 0 : index
    %c0_12 = arith.constant 0 : index
    %12 = vector.load %arg4[%c0_11, %c0_12] : memref<8x16xf32, #tpu.memory_space<vmem>>, vector<8x16xf32>
    %c0_13 = arith.constant 0 : index
    %c0_14 = arith.constant 0 : index
    %c0_15 = arith.constant 0 : index
    %13 = vector.load %arg11[%c0_13, %c0_14, %c0_15] : memref<5x8x16xf32, #tpu.memory_space<vmem>>, vector<1x8x16xf32>
    %14 = vector.shape_cast %13 : vector<1x8x16xf32> to vector<8x16xf32>
    %15 = vector.shape_cast %12 : vector<8x16xf32> to vector<1x8x16xf32>
    tpu.vector_store %arg11[%c0_13, %c0_14, %c0_15], %15 {strides = array<i32>} : memref<5x8x16xf32, #tpu.memory_space<vmem>>, vector<1x8x16xf32>,
    %c1_i32 = arith.constant 1 : i32
    %c4_i32 = arith.constant 4 : i32
    %16 = arith.addi %c1_i32, %c4_i32 : i32
    %c1_i32_16 = arith.constant 1 : i32
    %17 = scf.for %arg12 = %c1_i32 to %16 step %c1_i32_16 iter_args(%arg13 = %12) -> (vector<8x16xf32>)  : i32 {
      %c1_i32_18 = arith.constant 1 : i32
      %18 = arith.subi %arg12, %c1_i32_18 : i32
      %19 = arith.index_cast %18 : i32 to index
      %20 = memref.load %arg0[%19] : memref<4xi32, #tpu.memory_space<smem>>
      %c1_i32_19 = arith.constant 1 : i32
      %21 = arith.subi %arg12, %c1_i32_19 : i32
      %22 = arith.index_cast %21 : i32 to index
      %23 = memref.load %arg1[%22] : memref<4xf32, #tpu.memory_space<smem>>
      %24 = vector.broadcast %23 : f32 to vector<8x16xf32>
      %c1_i32_20 = arith.constant 1 : i32
      %25 = arith.subi %arg12, %c1_i32_20 : i32
      %26 = arith.index_cast %25 : i32 to index
      %27 = memref.load %arg2[%26] : memref<4xf32, #tpu.memory_space<smem>>
      %28 = vector.broadcast %27 : f32 to vector<8x16xf32>
      %c1_i32_21 = arith.constant 1 : i32
      %29 = arith.subi %arg12, %c1_i32_21 : i32
      %30 = arith.index_cast %29 : i32 to index
      %31 = memref.load %arg3[%30] : memref<4xf32, #tpu.memory_space<smem>>
      %32 = vector.broadcast %31 : f32 to vector<8x16xf32>
      %c0_i32 = arith.constant 0 : i32
      %33 = arith.subi %20, %c0_i32 : i32
      %34 = arith.addi %c0_i32, %33 : i32
      %c1_i32_22 = arith.constant 1 : i32
      %35 = scf.for %arg14 = %c0_i32 to %34 step %c1_i32_22 iter_args(%arg15 = %arg13) -> (vector<8x16xf32>)  : i32 {
        %cst = arith.constant dense<0.000000e+00> : vector<8x32xf32>
        %40 = tpu.matmul %arg15, %0, %cst {dimension_numbers = #tpu.dot_dimension_numbers<[1], [0], [0], [1], [0, 0, 1, 1], [], []>} : vector<8x16xf32>, vector<16x32xf32>, vector<8x32xf32> -> vector<8x32xf32>
        %41 = arith.addf %40, %5 : vector<8x32xf32>
        %cst_25 = arith.constant 0.000000e+00 : f32
        %42 = vector.broadcast %cst_25 : f32 to vector<8x32xf32>
        %43 = arith.maximumf %41, %42 : vector<8x32xf32>
        %cst_26 = arith.constant dense<0.000000e+00> : vector<8x16xf32>
        %44 = tpu.matmul %43, %1, %cst_26 {dimension_numbers = #tpu.dot_dimension_numbers<[1], [0], [0], [1], [0, 0, 1, 1], [], []>} : vector<8x32xf32>, vector<32x16xf32>, vector<8x16xf32> -> vector<8x16xf32>
        %45 = arith.addf %44, %8 : vector<8x16xf32>
        %cst_27 = arith.constant 0.000000e+00 : f32
        %46 = vector.broadcast %cst_27 : f32 to vector<8x16xf32>
        %47 = arith.subf %46, %45 : vector<8x16xf32>
        %cst_28 = arith.constant 0.000000e+00 : f32
        %48 = vector.broadcast %cst_28 : f32 to vector<8x16xf32>
        %49 = arith.maximumf %47, %48 : vector<8x16xf32>
        %50 = math.absf %45 : vector<8x16xf32>
        %cst_29 = arith.constant 0.000000e+00 : f32
        %51 = vector.broadcast %cst_29 : f32 to vector<8x16xf32>
        %52 = arith.subf %51, %50 : vector<8x16xf32>
        %53 = math.exp %52 : vector<8x16xf32>
        %cst_30 = arith.constant 1.000000e+00 : f32
        %54 = vector.broadcast %cst_30 : f32 to vector<8x16xf32>
        %55 = arith.addf %54, %53 : vector<8x16xf32>
        %56 = math.log %55 : vector<8x16xf32>
        %57 = arith.addf %49, %56 : vector<8x16xf32>
        %cst_31 = arith.constant dense<0.000000e+00> : vector<8x16xf32>
        %58 = tpu.matmul %57, %2, %cst_31 {dimension_numbers = #tpu.dot_dimension_numbers<[1], [0], [0], [1], [0, 0, 1, 1], [], []>} : vector<8x16xf32>, vector<16x16xf32>, vector<8x16xf32> -> vector<8x16xf32>
        %59 = arith.addf %58, %11 : vector<8x16xf32>
        %60 = arith.mulf %28, %59 : vector<8x16xf32>
        %61 = arith.addf %arg15, %60 : vector<8x16xf32>
        %cst_32 = arith.constant dense<0.000000e+00> : vector<8x32xf32>
        %62 = tpu.matmul %61, %0, %cst_32 {dimension_numbers = #tpu.dot_dimension_numbers<[1], [0], [0], [1], [0, 0, 1, 1], [], []>} : vector<8x16xf32>, vector<16x32xf32>, vector<8x32xf32> -> vector<8x32xf32>
        %63 = arith.addf %62, %5 : vector<8x32xf32>
        %cst_33 = arith.constant 0.000000e+00 : f32
        %64 = vector.broadcast %cst_33 : f32 to vector<8x32xf32>
        %65 = arith.maximumf %63, %64 : vector<8x32xf32>
        %cst_34 = arith.constant dense<0.000000e+00> : vector<8x16xf32>
        %66 = tpu.matmul %65, %1, %cst_34 {dimension_numbers = #tpu.dot_dimension_numbers<[1], [0], [0], [1], [0, 0, 1, 1], [], []>} : vector<8x32xf32>, vector<32x16xf32>, vector<8x16xf32> -> vector<8x16xf32>
        %67 = arith.addf %66, %8 : vector<8x16xf32>
        %cst_35 = arith.constant 0.000000e+00 : f32
        %68 = vector.broadcast %cst_35 : f32 to vector<8x16xf32>
        %69 = arith.subf %68, %67 : vector<8x16xf32>
        %cst_36 = arith.constant 0.000000e+00 : f32
        %70 = vector.broadcast %cst_36 : f32 to vector<8x16xf32>
        %71 = arith.maximumf %69, %70 : vector<8x16xf32>
        %72 = math.absf %67 : vector<8x16xf32>
        %cst_37 = arith.constant 0.000000e+00 : f32
        %73 = vector.broadcast %cst_37 : f32 to vector<8x16xf32>
        %74 = arith.subf %73, %72 : vector<8x16xf32>
        %75 = math.exp %74 : vector<8x16xf32>
        %cst_38 = arith.constant 1.000000e+00 : f32
        %76 = vector.broadcast %cst_38 : f32 to vector<8x16xf32>
        %77 = arith.addf %76, %75 : vector<8x16xf32>
        %78 = math.log %77 : vector<8x16xf32>
        %79 = arith.addf %71, %78 : vector<8x16xf32>
        %cst_39 = arith.constant dense<0.000000e+00> : vector<8x16xf32>
        %80 = tpu.matmul %79, %2, %cst_39 {dimension_numbers = #tpu.dot_dimension_numbers<[1], [0], [0], [1], [0, 0, 1, 1], [], []>} : vector<8x16xf32>, vector<16x16xf32>, vector<8x16xf32> -> vector<8x16xf32>
        %81 = arith.addf %80, %11 : vector<8x16xf32>
        %82 = arith.mulf %28, %81 : vector<8x16xf32>
        %83 = arith.addf %arg15, %82 : vector<8x16xf32>
        %cst_40 = arith.constant dense<0.000000e+00> : vector<8x32xf32>
        %84 = tpu.matmul %83, %0, %cst_40 {dimension_numbers = #tpu.dot_dimension_numbers<[1], [0], [0], [1], [0, 0, 1, 1], [], []>} : vector<8x16xf32>, vector<16x32xf32>, vector<8x32xf32> -> vector<8x32xf32>
        %85 = arith.addf %84, %5 : vector<8x32xf32>
        %cst_41 = arith.constant 0.000000e+00 : f32
        %86 = vector.broadcast %cst_41 : f32 to vector<8x32xf32>
        %87 = arith.maximumf %85, %86 : vector<8x32xf32>
        %cst_42 = arith.constant dense<0.000000e+00> : vector<8x16xf32>
        %88 = tpu.matmul %87, %1, %cst_42 {dimension_numbers = #tpu.dot_dimension_numbers<[1], [0], [0], [1], [0, 0, 1, 1], [], []>} : vector<8x32xf32>, vector<32x16xf32>, vector<8x16xf32> -> vector<8x16xf32>
        %89 = arith.addf %88, %8 : vector<8x16xf32>
        %cst_43 = arith.constant 0.000000e+00 : f32
        %90 = vector.broadcast %cst_43 : f32 to vector<8x16xf32>
        %91 = arith.subf %90, %89 : vector<8x16xf32>
        %cst_44 = arith.constant 0.000000e+00 : f32
        %92 = vector.broadcast %cst_44 : f32 to vector<8x16xf32>
        %93 = arith.maximumf %91, %92 : vector<8x16xf32>
        %94 = math.absf %89 : vector<8x16xf32>
        %cst_45 = arith.constant 0.000000e+00 : f32
        %95 = vector.broadcast %cst_45 : f32 to vector<8x16xf32>
        %96 = arith.subf %95, %94 : vector<8x16xf32>
        %97 = math.exp %96 : vector<8x16xf32>
        %cst_46 = arith.constant 1.000000e+00 : f32
        %98 = vector.broadcast %cst_46 : f32 to vector<8x16xf32>
        %99 = arith.addf %98, %97 : vector<8x16xf32>
        %100 = math.log %99 : vector<8x16xf32>
        %101 = arith.addf %93, %100 : vector<8x16xf32>
        %cst_47 = arith.constant dense<0.000000e+00> : vector<8x16xf32>
        %102 = tpu.matmul %101, %2, %cst_47 {dimension_numbers = #tpu.dot_dimension_numbers<[1], [0], [0], [1], [0, 0, 1, 1], [], []>} : vector<8x16xf32>, vector<16x16xf32>, vector<8x16xf32> -> vector<8x16xf32>
        %103 = arith.addf %102, %11 : vector<8x16xf32>
        %104 = arith.mulf %24, %103 : vector<8x16xf32>
        %105 = arith.addf %arg15, %104 : vector<8x16xf32>
        %cst_48 = arith.constant dense<0.000000e+00> : vector<8x32xf32>
        %106 = tpu.matmul %105, %0, %cst_48 {dimension_numbers = #tpu.dot_dimension_numbers<[1], [0], [0], [1], [0, 0, 1, 1], [], []>} : vector<8x16xf32>, vector<16x32xf32>, vector<8x32xf32> -> vector<8x32xf32>
        %107 = arith.addf %106, %5 : vector<8x32xf32>
        %cst_49 = arith.constant 0.000000e+00 : f32
        %108 = vector.broadcast %cst_49 : f32 to vector<8x32xf32>
        %109 = arith.maximumf %107, %108 : vector<8x32xf32>
        %cst_50 = arith.constant dense<0.000000e+00> : vector<8x16xf32>
        %110 = tpu.matmul %109, %1, %cst_50 {dimension_numbers = #tpu.dot_dimension_numbers<[1], [0], [0], [1], [0, 0, 1, 1], [], []>} : vector<8x32xf32>, vector<32x16xf32>, vector<8x16xf32> -> vector<8x16xf32>
        %111 = arith.addf %110, %8 : vector<8x16xf32>
        %cst_51 = arith.constant 0.000000e+00 : f32
        %112 = vector.broadcast %cst_51 : f32 to vector<8x16xf32>
        %113 = arith.subf %112, %111 : vector<8x16xf32>
        %cst_52 = arith.constant 0.000000e+00 : f32
        %114 = vector.broadcast %cst_52 : f32 to vector<8x16xf32>
        %115 = arith.maximumf %113, %114 : vector<8x16xf32>
        %116 = math.absf %111 : vector<8x16xf32>
        %cst_53 = arith.constant 0.000000e+00 : f32
        %117 = vector.broadcast %cst_53 : f32 to vector<8x16xf32>
        %118 = arith.subf %117, %116 : vector<8x16xf32>
        %119 = math.exp %118 : vector<8x16xf32>
        %cst_54 = arith.constant 1.000000e+00 : f32
        %120 = vector.broadcast %cst_54 : f32 to vector<8x16xf32>
        %121 = arith.addf %120, %119 : vector<8x16xf32>
        %122 = math.log %121 : vector<8x16xf32>
        %123 = arith.addf %115, %122 : vector<8x16xf32>
        %cst_55 = arith.constant dense<0.000000e+00> : vector<8x16xf32>
        %124 = tpu.matmul %123, %2, %cst_55 {dimension_numbers = #tpu.dot_dimension_numbers<[1], [0], [0], [1], [0, 0, 1, 1], [], []>} : vector<8x16xf32>, vector<16x16xf32>, vector<8x16xf32> -> vector<8x16xf32>
        %125 = arith.addf %124, %11 : vector<8x16xf32>
        %cst_56 = arith.constant 2.000000e+00 : f32
        %126 = vector.broadcast %cst_56 : f32 to vector<8x16xf32>
        %127 = arith.mulf %126, %81 : vector<8x16xf32>
        %128 = arith.addf %59, %127 : vector<8x16xf32>
        %cst_57 = arith.constant 2.000000e+00 : f32
        %129 = vector.broadcast %cst_57 : f32 to vector<8x16xf32>
        %130 = arith.mulf %129, %103 : vector<8x16xf32>
        %131 = arith.addf %128, %130 : vector<8x16xf32>
        %132 = arith.addf %131, %125 : vector<8x16xf32>
        %133 = arith.mulf %32, %132 : vector<8x16xf32>
        %134 = arith.addf %arg15, %133 : vector<8x16xf32>
        scf.yield %134 : vector<8x16xf32>
      }
      %36 = arith.index_cast %arg12 : i32 to index
      %c0_23 = arith.constant 0 : index
      %c0_24 = arith.constant 0 : index
      %37 = vector.load %arg11[%36, %c0_23, %c0_24] : memref<5x8x16xf32, #tpu.memory_space<vmem>>, vector<1x8x16xf32>
      %38 = vector.shape_cast %37 : vector<1x8x16xf32> to vector<8x16xf32>
      %39 = vector.shape_cast %35 : vector<8x16xf32> to vector<1x8x16xf32>
      tpu.vector_store %arg11[%36, %c0_23, %c0_24], %39 {strides = array<i32>} : memref<5x8x16xf32, #tpu.memory_space<vmem>>, vector<1x8x16xf32>,
      scf.yield %35 : vector<8x16xf32>
    }
    %c4_i32_17 = arith.constant 4 : i32
    return
  }
}

</mosaic_0001>

<llo_original>
// kernel: neural_ode_decoder_forward.1
$region0: #{neural_ode_decoder_forward.1}
  #allocation0 [shape = 'u32[]', space=smem, size = 0x4, offset = 0x4, fixed_abs, tag = 'smem constant byte address 0x4 - core index']
  #allocation1 [shape = 'u32[72,128]{1,0:T(1,128)}', space=vmem, size = 0x9000, scoped, tag = 'internal scratch']
  %s0 = inlined_call_operand.vmem [shape: s32[4], index: 0, kind: input, shape index: {}]
  %s1 = inlined_call_operand.vmem [shape: f32[4], index: 1, kind: input, shape index: {}]
  %s2 = inlined_call_operand.vmem [shape: f32[4], index: 2, kind: input, shape index: {}]
  %s3 = inlined_call_operand.vmem [shape: f32[4], index: 3, kind: input, shape index: {}]
  %s4 = inlined_call_operand.vmem [shape: f32[8,16], index: 4, kind: input, shape index: {}]
  %s5 = inlined_call_operand.vmem [shape: f32[16,32], index: 5, kind: input, shape index: {}]
  %s6 = inlined_call_operand.vmem [shape: f32[1,32], index: 6, kind: input, shape index: {}]
  %s7 = inlined_call_operand.vmem [shape: f32[32,16], index: 7, kind: input, shape index: {}]
  %s8 = inlined_call_operand.vmem [shape: f32[1,16], index: 8, kind: input, shape index: {}]
  %s9 = inlined_call_operand.vmem [shape: f32[16,16], index: 9, kind: input, shape index: {}]
  %s10 = inlined_call_operand.vmem [shape: f32[1,16], index: 10, kind: input, shape index: {}]
  %s11 = inlined_call_operand.hbm [shape: f32[5,8,16], index: 11, kind: output, shape index: {}]
  %s12 = sld [smem:[#allocation0]]
  $region84: #{neural_ode_decoder_forward.1} parent=0
    _
  %s14 = ssub.s32 1, %s12
  %s15 = scalar_select 0, %s14, %s12
  $region1: #{neural_ode_decoder_forward.1} parent=0
    #allocation2 [shape = 'u8[512]{0}', space=smem, size = 0x200, scoped, tag = 'input window, operand 0, single buffered']
    #allocation3 [shape = 's32[1]{0}', space=sflag, size = 0x4, scoped, tag = 'scoped memory for neural_ode_decoder_forward.1']
    #allocation4 [shape = 's32[1]{0}', space=sflag, size = 0x4, scoped, tag = 'scoped memory for neural_ode_decoder_forward.1']
    #allocation5 [shape = 'u8[512]{0}', space=smem, size = 0x200, scoped, tag = 'input window, operand 1, single buffered']
    #allocation6 [shape = 's32[1]{0}', space=sflag, size = 0x4, scoped, tag = 'scoped memory for neural_ode_decoder_forward.1']
    #allocation7 [shape = 'u8[512]{0}', space=smem, size = 0x200, scoped, tag = 'input window, operand 2, single buffered']
    #allocation8 [shape = 'u8[512]{0}', space=smem, size = 0x200, scoped, tag = 'input window, operand 3, single buffered']
    #allocation9 [shape = 's32[1]{0}', space=sflag, size = 0x4, scoped, tag = 'scoped memory for neural_ode_decoder_forward.1']
    #allocation10 [shape = 'u8[20480]{0}', space=vmem, size = 0x5000, scoped, tag = 'output window, operand 0, single buffered']
    %16 = vsyncpa [#allocation4], 0
    %17 = vsyncpa [#allocation6], 0
    %18 = vsyncpa [#allocation9], 0
    %19 = vsyncpa [#allocation3], 0
    // Predicated region
    $region2: #{neural_ode_decoder_forward.1} parent=1 // pred_check
      _
    $region3: #{neural_ode_decoder_forward.1} parent=1 // pred_check_branch
      %21 = sbr.rel (0) target = $region5
    $region4: #{neural_ode_decoder_forward.1} parent=1 // pred_region
      %23 = vsyncadd [#allocation4], 0
      %s25 = sshll.u32 %s0, 4
      %s26 = int_to_ptr.vmem [resolvable:$true] %s25
      %28 = dma.vmem_to_smem %s26, 16, [#allocation2], [#allocation4]
    $region5: #{neural_ode_decoder_forward.1} parent=1 // pred_fallthru
      _
    // Predicated region
    $region6: #{neural_ode_decoder_forward.1} parent=1 // pred_check
      _
    $region7: #{neural_ode_decoder_forward.1} parent=1 // pred_check_branch
      %30 = sbr.rel (0) target = $region9
    $region8: #{neural_ode_decoder_forward.1} parent=1 // pred_region
      %32 = vsyncadd [#allocation6], 0
      %s34 = sshll.u32 %s1, 4
      %s35 = int_to_ptr.vmem [resolvable:$true] %s34
      %37 = dma.vmem_to_smem %s35, 16, [#allocation5], [#allocation6]
    $region9: #{neural_ode_decoder_forward.1} parent=1 // pred_fallthru
      _
    // Predicated region
    $region10: #{neural_ode_decoder_forward.1} parent=1 // pred_check
      _
    $region11: #{neural_ode_decoder_forward.1} parent=1 // pred_check_branch
      %39 = sbr.rel (0) target = $region13
    $region12: #{neural_ode_decoder_forward.1} parent=1 // pred_region
      %41 = vsyncadd [#allocation6], 0
      %s43 = sshll.u32 %s2, 4
      %s44 = int_to_ptr.vmem [resolvable:$true] %s43
      %46 = dma.vmem_to_smem %s44, 16, [#allocation7], [#allocation6]
    $region13: #{neural_ode_decoder_forward.1} parent=1 // pred_fallthru
      _
    // Predicated region
    $region14: #{neural_ode_decoder_forward.1} parent=1 // pred_check
      _
    $region15: #{neural_ode_decoder_forward.1} parent=1 // pred_check_branch
      %48 = sbr.rel (0) target = $region17
    $region16: #{neural_ode_decoder_forward.1} parent=1 // pred_region
      %50 = vsyncadd [#allocation9], 0
      %s52 = sshll.u32 %s3, 4
      %s53 = int_to_ptr.vmem [resolvable:$true] %s52
      %55 = dma.vmem_to_smem %s53, 16, [#allocation8], [#allocation9]
    $region17: #{neural_ode_decoder_forward.1} parent=1 // pred_fallthru
      _
    // Predicated region
    $region18: #{neural_ode_decoder_forward.1} parent=1 // pred_check
      _
    $region19: #{neural_ode_decoder_forward.1} parent=1 // pred_check_branch
      %57 = sbr.rel (0) target = $region21
    $region20: #{neural_ode_decoder_forward.1} parent=1 // pred_region
      _
    $region21: #{neural_ode_decoder_forward.1} parent=1 // pred_fallthru
      _
    // Predicated region
    $region22: #{neural_ode_decoder_forward.1} parent=1 // pred_check
      _
    $region23: #{neural_ode_decoder_forward.1} parent=1 // pred_check_branch
      %59 = sbr.rel (0) target = $region25
    $region24: #{neural_ode_decoder_forward.1} parent=1 // pred_region
      _
    $region25: #{neural_ode_decoder_forward.1} parent=1 // pred_fallthru
      _
    // Predicated region
    $region26: #{neural_ode_decoder_forward.1} parent=1 // pred_check
      _
    $region27: #{neural_ode_decoder_forward.1} parent=1 // pred_check_branch
      %61 = sbr.rel (0) target = $region29
    $region28: #{neural_ode_decoder_forward.1} parent=1 // pred_region
      _
    $region29: #{neural_ode_decoder_forward.1} parent=1 // pred_fallthru
      _
    // Predicated region
    $region30: #{neural_ode_decoder_forward.1} parent=1 // pred_check
      _
    $region31: #{neural_ode_decoder_forward.1} parent=1 // pred_check_branch
      %63 = sbr.rel (0) target = $region33
    $region32: #{neural_ode_decoder_forward.1} parent=1 // pred_region
      _
    $region33: #{neural_ode_decoder_forward.1} parent=1 // pred_fallthru
      _
    // Predicated region
    $region34: #{neural_ode_decoder_forward.1} parent=1 // pred_check
      _
    $region35: #{neural_ode_decoder_forward.1} parent=1 // pred_check_branch
      %65 = sbr.rel (0) target = $region37
    $region36: #{neural_ode_decoder_forward.1} parent=1 // pred_region
      _
    $region37: #{neural_ode_decoder_forward.1} parent=1 // pred_fallthru
      _
    // Predicated region
    $region38: #{neural_ode_decoder_forward.1} parent=1 // pred_check
      _
    $region39: #{neural_ode_decoder_forward.1} parent=1 // pred_check_branch
      %67 = sbr.rel (0) target = $region41
    $region40: #{neural_ode_decoder_forward.1} parent=1 // pred_region
      _
    $region41: #{neural_ode_decoder_forward.1} parent=1 // pred_fallthru
      _
    // Predicated region
    $region42: #{neural_ode_decoder_forward.1} parent=1 // pred_check
      _
    $region43: #{neural_ode_decoder_forward.1} parent=1 // pred_check_branch
      %69 = sbr.rel (0) target = $region45
    $region44: #{neural_ode_decoder_forward.1} parent=1 // pred_region
      _
    $region45: #{neural_ode_decoder_forward.1} parent=1 // pred_fallthru
      _
    // Predicated region
    $region46: #{neural_ode_decoder_forward.1} parent=1 // pred_check
      _
    $region47: #{neural_ode_decoder_forward.1} parent=1 // pred_check_branch
      %71 = sbr.rel (0) target = $region49
    $region48: #{neural_ode_decoder_forward.1} parent=1 // pred_region
      %73 = dma.done [#allocation4], 16
    $region49: #{neural_ode_decoder_forward.1} parent=1 // pred_fallthru
      _
    // Predicated region
    $region50: #{neural_ode_decoder_forward.1} parent=1 // pred_check
      _
    $region51: #{neural_ode_decoder_forward.1} parent=1 // pred_check_branch
      %75 = sbr.rel (0) target = $region53
    $region52: #{neural_ode_decoder_forward.1} parent=1 // pred_region
      %77 = dma.done [#allocation6], 16
    $region53: #{neural_ode_decoder_forward.1} parent=1 // pred_fallthru
      _
    // Predicated region
    $region54: #{neural_ode_decoder_forward.1} parent=1 // pred_check
      _
    $region55: #{neural_ode_decoder_forward.1} parent=1 // pred_check_branch
      %79 = sbr.rel (0) target = $region57
    $region56: #{neural_ode_decoder_forward.1} parent=1 // pred_region
      %81 = dma.done [#allocation6], 16
    $region57: #{neural_ode_decoder_forward.1} parent=1 // pred_fallthru
      _
    // Predicated region
    $region58: #{neural_ode_decoder_forward.1} parent=1 // pred_check
      _
    $region59: #{neural_ode_decoder_forward.1} parent=1 // pred_check_branch
      %83 = sbr.rel (0) target = $region61
    $region60: #{neural_ode_decoder_forward.1} parent=1 // pred_region
      %85 = dma.done [#allocation9], 16
    $region61: #{neural_ode_decoder_forward.1} parent=1 // pred_fallthru
      _
    %86 = sfence
    %v87 = vld [vmem:[%s5] sm:$0xff]
    %v88 = vld [vmem:[%s5 + $0x8] sm:$0xff]
    %v89 = vld [vmem:[%s7] sm:$0xff]
    %v90 = vld [vmem:[%s7 + $0x8] sm:$0xff]
    %v91 = vld [vmem:[%s7 + $0x10] sm:$0xff]
    %v92 = vld [vmem:[%s7 + $0x18] sm:$0xff]
    %v93 = vld [vmem:[%s9] sm:$0xff]
    %v94 = vld [vmem:[%s9 + $0x8] sm:$0xff]
    %v95 = vld [vmem:[%s6] sm:$0x1]
    %v97 = vperm.slane %v95, 0
    %v99 = vld [vmem:[%s8] sm:$0x1]
    %v101 = vperm.slane %v99, 0
    %v103 = vld [vmem:[%s10] sm:$0x1]
    %v105 = vperm.slane %v103, 0
    %v107 = vld [vmem:[%s4] sm:$0xff]
    %vm108 = vcmask 130048
    %109 = vst.msk [vmem:[#allocation10] sm:$0xff] %vm108, %v107
    loop: start=1, step=1, limit=5
    $region62: #{neural_ode_decoder_forward.1} parent=1 // loop_pre_header
      _
    $region63: #{neural_ode_decoder_forward.1} parent=1 // loop_header
      %s111 = sphi 1, %s115
      %p112 = scmp.ge.s32.totalorder %s111, 5
      %v116 = vphi %v107, %v131
    $region64: #{neural_ode_decoder_forward.1} parent=1 // loop_header_branch
      %114 = sbr.rel (%p112) target = $region68
    $region65: #{neural_ode_decoder_forward.1} parent=1 // loop_body
      %s117 = ssub.s32 %s111, 1
      %s118 = sld [smem:[#allocation2 + %s117]]
      %s119 = sld [smem:[#allocation5 + %s117]]
      %v120 = vstv %s119
      %s121 = sld [smem:[#allocation7 + %s117]]
      %v122 = vstv %s121
      %s123 = sld [smem:[#allocation8 + %s117]]
      %v124 = vstv %s123
      // While loop
      $region69: #{neural_ode_decoder_forward.1} parent=65 // loop_pre_header
        _
      $region70: #{neural_ode_decoder_forward.1} parent=65 // loop_header
        %s126 = sphi 0, %s128
        %p127 = scmp.ge.s32.totalorder %s126, %s118
        %v131 = vphi %v116, %v465
      $region71: #{neural_ode_decoder_forward.1} parent=65 // loop_header_branch
        %130 = sbr.rel (%p127) target = $region75
      $region72: #{neural_ode_decoder_forward.1} parent=65 // loop_body
        %v133 = vsel %vm108, %v131, 0
        %135 = vmatpush.msra.mxu0 0.0
        %136 = vmatpush.msra.mxu0 0.0
        %137 = vmatpush.msra.mxu0 0.0
        %138 = vmatpush.msra.mxu0 0.0
        %139 = vmatpush.msra.mxu0 0.0
        %140 = vmatpush.msra.mxu0 0.0
        %141 = vmatpush.msra.mxu0 0.0
        %142 = vmatpush.msra.mxu0 0.0
        %143 = vmatpush.msra.mxu0 0.0
        %144 = vmatpush.msra.mxu0 0.0
        %145 = vmatpush.msra.mxu0 0.0
        %146 = vmatpush.msra.mxu0 0.0
        %147 = vmatpush.msra.mxu0 0.0
        %148 = vmatpush.msra.mxu0 0.0
        %149 = vmatpush.msra.mxu0 %v88
        %150 = vmatpush.msra.mxu0 %v87
        %151 = vmatmul.f32.gmra.mxu0 %v133
        %v152 = vpop.f32.mrf.mxu0
        %v153 = vadd.f32 %v97, %v152
        %154 = vdwg.mxu0
        %v155 = vmax.f32 %v153, 0.0
        %vm156 = vcmask 261120
        %v158 = vsel %vm156, %v155, 0
        %160 = vmatpush.msra.mxu0 0.0
        %161 = vmatpush.msra.mxu0 0.0
        %162 = vmatpush.msra.mxu0 0.0
        %163 = vmatpush.msra.mxu0 0.0
        %164 = vmatpush.msra.mxu0 0.0
        %165 = vmatpush.msra.mxu0 0.0
        %166 = vmatpush.msra.mxu0 0.0
        %167 = vmatpush.msra.mxu0 0.0
        %168 = vmatpush.msra.mxu0 0.0
        %169 = vmatpush.msra.mxu0 0.0
        %170 = vmatpush.msra.mxu0 0.0
        %171 = vmatpush.msra.mxu0 0.0
        %172 = vmatpush.msra.mxu0 %v92
        %173 = vmatpush.msra.mxu0 %v91
        %174 = vmatpush.msra.mxu0 %v90
        %175 = vmatpush.msra.mxu0 %v89
        %176 = vmatmul.f32.gmra.mxu0 %v158
        %v177 = vpop.f32.mrf.mxu0
        %v178 = vadd.f32 %v101, %v177
        %179 = vdwg.mxu0
        %v180 = vsub.f32 0.0, %v178
        %v181 = vmax.f32 %v180, 0.0
        %v182 = vand.u32 2147483647, %v178
        %v183 = vsub.f32 0.0, %v182
        %v184 = vmul.f32 %v183, 1.442695
        %v185 = vpow.pop %v184
        %v186 = vadd.f32 %v185, 1.0
        %v187 = vlog2.pop %v186
        %v188 = vmul.f32 %v187, 0.6931472
        %v189 = vadd.f32 %v181, %v188
        %v191 = vsel %vm108, %v189, 0
        %193 = vmatpush.msra.mxu0 0.0
        %194 = vmatpush.msra.mxu0 0.0
        %195 = vmatpush.msra.mxu0 0.0
        %196 = vmatpush.msra.mxu0 0.0
        %197 = vmatpush.msra.mxu0 0.0
        %198 = vmatpush.msra.mxu0 0.0
        %199 = vmatpush.msra.mxu0 0.0
        %200 = vmatpush.msra.mxu0 0.0
        %201 = vmatpush.msra.mxu0 0.0
        %202 = vmatpush.msra.mxu0 0.0
        %203 = vmatpush.msra.mxu0 0.0
        %204 = vmatpush.msra.mxu0 0.0
        %205 = vmatpush.msra.mxu0 0.0
        %206 = vmatpush.msra.mxu0 0.0
        %207 = vmatpush.msra.mxu0 %v94
        %208 = vmatpush.msra.mxu0 %v93
        %209 = vmatmul.f32.gmra.mxu0 %v191
        %v210 = vpop.f32.mrf.mxu0
        %v211 = vadd.f32 %v105, %v210
        %212 = vdwg.mxu0
        %v213 = vmul.f32 %v122, %v211
        %v214 = vadd.f32 %v131, %v213
        %v216 = vsel %vm108, %v214, 0
        %218 = vmatpush.msra.mxu0 0.0
        %219 = vmatpush.msra.mxu0 0.0
        %220 = vmatpush.msra.mxu0 0.0
        %221 = vmatpush.msra.mxu0 0.0
        %222 = vmatpush.msra.mxu0 0.0
        %223 = vmatpush.msra.mxu0 0.0
        %224 = vmatpush.msra.mxu0 0.0
        %225 = vmatpush.msra.mxu0 0.0
        %226 = vmatpush.msra.mxu0 0.0
        %227 = vmatpush.msra.mxu0 0.0
        %228 = vmatpush.msra.mxu0 0.0
        %229 = vmatpush.msra.mxu0 0.0
        %230 = vmatpush.msra.mxu0 0.0
        %231 = vmatpush.msra.mxu0 0.0
        %232 = vmatpush.msra.mxu0 %v88
        %233 = vmatpush.msra.mxu0 %v87
        %234 = vmatmul.f32.gmra.mxu0 %v216
        %v235 = vpop.f32.mrf.mxu0
        %v236 = vadd.f32 %v97, %v235
        %237 = vdwg.mxu0
        %v238 = vmax.f32 %v236, 0.0
        %v240 = vsel %vm156, %v238, 0
        %242 = vmatpush.msra.mxu0 0.0
        %243 = vmatpush.msra.mxu0 0.0
        %244 = vmatpush.msra.mxu0 0.0
        %245 = vmatpush.msra.mxu0 0.0
        %246 = vmatpush.msra.mxu0 0.0
        %247 = vmatpush.msra.mxu0 0.0
        %248 = vmatpush.msra.mxu0 0.0
        %249 = vmatpush.msra.mxu0 0.0
        %250 = vmatpush.msra.mxu0 0.0
        %251 = vmatpush.msra.mxu0 0.0
        %252 = vmatpush.msra.mxu0 0.0
        %253 = vmatpush.msra.mxu0 0.0
        %254 = vmatpush.msra.mxu0 %v92
        %255 = vmatpush.msra.mxu0 %v91
        %256 = vmatpush.msra.mxu0 %v90
        %257 = vmatpush.msra.mxu0 %v89
        %258 = vmatmul.f32.gmra.mxu0 %v240
        %v259 = vpop.f32.mrf.mxu0
        %v260 = vadd.f32 %v101, %v259
        %261 = vdwg.mxu0
        %v262 = vsub.f32 0.0, %v260
        %v263 = vmax.f32 %v262, 0.0
        %v264 = vand.u32 2147483647, %v260
        %v265 = vsub.f32 0.0, %v264
        %v266 = vmul.f32 %v265, 1.442695
        %v267 = vpow.pop %v266
        %v268 = vadd.f32 %v267, 1.0
        %v269 = vlog2.pop %v268
        %v270 = vmul.f32 %v269, 0.6931472
        %v271 = vadd.f32 %v263, %v270
        %v273 = vsel %vm108, %v271, 0
        %275 = vmatpush.msra.mxu0 0.0
        %276 = vmatpush.msra.mxu0 0.0
        %277 = vmatpush.msra.mxu0 0.0
        %278 = vmatpush.msra.mxu0 0.0
        %279 = vmatpush.msra.mxu0 0.0
        %280 = vmatpush.msra.mxu0 0.0
        %281 = vmatpush.msra.mxu0 0.0
        %282 = vmatpush.msra.mxu0 0.0
        %283 = vmatpush.msra.mxu0 0.0
        %284 = vmatpush.msra.mxu0 0.0
        %285 = vmatpush.msra.mxu0 0.0
        %286 = vmatpush.msra.mxu0 0.0
        %287 = vmatpush.msra.mxu0 0.0
        %288 = vmatpush.msra.mxu0 0.0
        %289 = vmatpush.msra.mxu0 %v94
        %290 = vmatpush.msra.mxu0 %v93
        %291 = vmatmul.f32.gmra.mxu0 %v273
        %v292 = vpop.f32.mrf.mxu0
        %v293 = vadd.f32 %v105, %v292
        %294 = vdwg.mxu0
        %v295 = vmul.f32 %v122, %v293
        %v296 = vadd.f32 %v131, %v295
        %v298 = vsel %vm108, %v296, 0
        %300 = vmatpush.msra.mxu0 0.0
        %301 = vmatpush.msra.mxu0 0.0
        %302 = vmatpush.msra.mxu0 0.0
        %303 = vmatpush.msra.mxu0 0.0
        %304 = vmatpush.msra.mxu0 0.0
        %305 = vmatpush.msra.mxu0 0.0
        %306 = vmatpush.msra.mxu0 0.0
        %307 = vmatpush.msra.mxu0 0.0
        %308 = vmatpush.msra.mxu0 0.0
        %309 = vmatpush.msra.mxu0 0.0
        %310 = vmatpush.msra.mxu0 0.0
        %311 = vmatpush.msra.mxu0 0.0
        %312 = vmatpush.msra.mxu0 0.0
        %313 = vmatpush.msra.mxu0 0.0
        %314 = vmatpush.msra.mxu0 %v88
        %315 = vmatpush.msra.mxu0 %v87
        %316 = vmatmul.f32.gmra.mxu0 %v298
        %v317 = vpop.f32.mrf.mxu0
        %v318 = vadd.f32 %v97, %v317
        %319 = vdwg.mxu0
        %v320 = vmax.f32 %v318, 0.0
        %v322 = vsel %vm156, %v320, 0
        %324 = vmatpush.msra.mxu0 0.0
        %325 = vmatpush.msra.mxu0 0.0
        %326 = vmatpush.msra.mxu0 0.0
        %327 = vmatpush.msra.mxu0 0.0
        %328 = vmatpush.msra.mxu0 0.0
        %329 = vmatpush.msra.mxu0 0.0
        %330 = vmatpush.msra.mxu0 0.0
        %331 = vmatpush.msra.mxu0 0.0
        %332 = vmatpush.msra.mxu0 0.0
        %333 = vmatpush.msra.mxu0 0.0
        %334 = vmatpush.msra.mxu0 0.0
        %335 = vmatpush.msra.mxu0 0.0
        %336 = vmatpush.msra.mxu0 %v92
        %337 = vmatpush.msra.mxu0 %v91
        %338 = vmatpush.msra.mxu0 %v90
        %339 = vmatpush.msra.mxu0 %v89
        %340 = vmatmul.f32.gmra.mxu0 %v322
        %v341 = vpop.f32.mrf.mxu0
        %v342 = vadd.f32 %v101, %v341
        %343 = vdwg.mxu0
        %v344 = vsub.f32 0.0, %v342
        %v345 = vmax.f32 %v344, 0.0
        %v346 = vand.u32 2147483647, %v342
        %v347 = vsub.f32 0.0, %v346
        %v348 = vmul.f32 %v347, 1.442695
        %v349 = vpow.pop %v348
        %v350 = vadd.f32 %v349, 1.0
        %v351 = vlog2.pop %v350
        %v352 = vmul.f32 %v351, 0.6931472
        %v353 = vadd.f32 %v345, %v352
        %v355 = vsel %vm108, %v353, 0
        %357 = vmatpush.msra.mxu0 0.0
        %358 = vmatpush.msra.mxu0 0.0
        %359 = vmatpush.msra.mxu0 0.0
        %360 = vmatpush.msra.mxu0 0.0
        %361 = vmatpush.msra.mxu0 0.0
        %362 = vmatpush.msra.mxu0 0.0
        %363 = vmatpush.msra.mxu0 0.0
        %364 = vmatpush.msra.mxu0 0.0
        %365 = vmatpush.msra.mxu0 0.0
        %366 = vmatpush.msra.mxu0 0.0
        %367 = vmatpush.msra.mxu0 0.0
        %368 = vmatpush.msra.mxu0 0.0
        %369 = vmatpush.msra.mxu0 0.0
        %370 = vmatpush.msra.mxu0 0.0
        %371 = vmatpush.msra.mxu0 %v94
        %372 = vmatpush.msra.mxu0 %v93
        %373 = vmatmul.f32.gmra.mxu0 %v355
        %v374 = vpop.f32.mrf.mxu0
        %v375 = vadd.f32 %v105, %v374
        %376 = vdwg.mxu0
        %v377 = vmul.f32 %v120, %v375
        %v378 = vadd.f32 %v131, %v377
        %v380 = vsel %vm108, %v378, 0
        %382 = vmatpush.msra.mxu0 0.0
        %383 = vmatpush.msra.mxu0 0.0
        %384 = vmatpush.msra.mxu0 0.0
        %385 = vmatpush.msra.mxu0 0.0
        %386 = vmatpush.msra.mxu0 0.0
        %387 = vmatpush.msra.mxu0 0.0
        %388 = vmatpush.msra.mxu0 0.0
        %389 = vmatpush.msra.mxu0 0.0
        %390 = vmatpush.msra.mxu0 0.0
        %391 = vmatpush.msra.mxu0 0.0
        %392 = vmatpush.msra.mxu0 0.0
        %393 = vmatpush.msra.mxu0 0.0
        %394 = vmatpush.msra.mxu0 0.0
        %395 = vmatpush.msra.mxu0 0.0
        %396 = vmatpush.msra.mxu0 %v88
        %397 = vmatpush.msra.mxu0 %v87
        %398 = vmatmul.f32.gmra.mxu0 %v380
        %v399 = vpop.f32.mrf.mxu0
        %v400 = vadd.f32 %v97, %v399
        %401 = vdwg.mxu0
        %v402 = vmax.f32 %v400, 0.0
        %v404 = vsel %vm156, %v402, 0
        %406 = vmatpush.msra.mxu0 0.0
        %407 = vmatpush.msra.mxu0 0.0
        %408 = vmatpush.msra.mxu0 0.0
        %409 = vmatpush.msra.mxu0 0.0
        %410 = vmatpush.msra.mxu0 0.0
        %411 = vmatpush.msra.mxu0 0.0
        %412 = vmatpush.msra.mxu0 0.0
        %413 = vmatpush.msra.mxu0 0.0
        %414 = vmatpush.msra.mxu0 0.0
        %415 = vmatpush.msra.mxu0 0.0
        %416 = vmatpush.msra.mxu0 0.0
        %417 = vmatpush.msra.mxu0 0.0
        %418 = vmatpush.msra.mxu0 %v92
        %419 = vmatpush.msra.mxu0 %v91
        %420 = vmatpush.msra.mxu0 %v90
        %421 = vmatpush.msra.mxu0 %v89
        %422 = vmatmul.f32.gmra.mxu0 %v404
        %v423 = vpop.f32.mrf.mxu0
        %v424 = vadd.f32 %v101, %v423
        %425 = vdwg.mxu0
        %v426 = vsub.f32 0.0, %v424
        %v427 = vmax.f32 %v426, 0.0
        %v428 = vand.u32 2147483647, %v424
        %v429 = vsub.f32 0.0, %v428
        %v430 = vmul.f32 %v429, 1.442695
        %v431 = vpow.pop %v430
        %v432 = vadd.f32 %v431, 1.0
        %v433 = vlog2.pop %v432
        %v434 = vmul.f32 %v433, 0.6931472
        %v435 = vadd.f32 %v427, %v434
        %v437 = vsel %vm108, %v435, 0
        %439 = vmatpush.msra.mxu0 0.0
        %440 = vmatpush.msra.mxu0 0.0
        %441 = vmatpush.msra.mxu0 0.0
        %442 = vmatpush.msra.mxu0 0.0
        %443 = vmatpush.msra.mxu0 0.0
        %444 = vmatpush.msra.mxu0 0.0
        %445 = vmatpush.msra.mxu0 0.0
        %446 = vmatpush.msra.mxu0 0.0
        %447 = vmatpush.msra.mxu0 0.0
        %448 = vmatpush.msra.mxu0 0.0
        %449 = vmatpush.msra.mxu0 0.0
        %450 = vmatpush.msra.mxu0 0.0
        %451 = vmatpush.msra.mxu0 0.0
        %452 = vmatpush.msra.mxu0 0.0
        %453 = vmatpush.msra.mxu0 %v94
        %454 = vmatpush.msra.mxu0 %v93
        %455 = vmatmul.f32.gmra.mxu0 %v437
        %v456 = vpop.f32.mrf.mxu0
        %v457 = vadd.f32 %v105, %v456
        %458 = vdwg.mxu0
        %v459 = vmul.f32 %v293, 2.0
        %v460 = vadd.f32 %v211, %v459
        %v461 = vmul.f32 %v375, 2.0
        %v462 = vadd.f32 %v460, %v461
        %v463 = vadd.f32 %v462, %v457
        %v464 = vmul.f32 %v124, %v463
        %v465 = vadd.f32 %v131, %v464
      $region73: #{neural_ode_decoder_forward.1} parent=65 // loop_footer
        %s128 = sadd.s32 %s126, 1
      $region74: #{neural_ode_decoder_forward.1} parent=65 // loop_footer_branch
        %125 = sbr.rel target = $region70
      $region75: #{neural_ode_decoder_forward.1} parent=65 // loop_exit
        _
      %s466 = smul.u32 %s111, 8
      %s467 = scalar_lea.vmem [#allocation10], %s466
      %468 = vst.msk [vmem:[%s467] sm:$0xff] %vm108, %v131
    $region66: #{neural_ode_decoder_forward.1} parent=1 // loop_footer
      %s115 = sadd.s32 1, %s111
    $region67: #{neural_ode_decoder_forward.1} parent=1 // loop_footer_branch
      %110 = sbr.rel target = $region63
    $region68: #{neural_ode_decoder_forward.1} parent=1 // loop_exit
      _
    // Predicated region
    $region76: #{neural_ode_decoder_forward.1} parent=1 // pred_check
      _
    $region77: #{neural_ode_decoder_forward.1} parent=1 // pred_check_branch
      %470 = sbr.rel (0) target = $region79
    $region78: #{neural_ode_decoder_forward.1} parent=1 // pred_region
      %472 = vsyncadd [#allocation3], 0
      %s473 = sshll.u32 [#allocation10], 4
      %s474 = int_to_ptr.vmem [resolvable:$true] %s473
      %s475 = sshll.u32 %s11, 4
      %s476 = int_to_ptr.hbm [resolvable:$true] %s475
      %481 = dma.vmem_to_hbm [thread:$0]  %s474, 640, %s476, [#allocation3], 128, 128, 8
    $region79: #{neural_ode_decoder_forward.1} parent=1 // pred_fallthru
      _
    // Predicated region
    $region80: #{neural_ode_decoder_forward.1} parent=1 // pred_check
      _
    $region81: #{neural_ode_decoder_forward.1} parent=1 // pred_check_branch
      %483 = sbr.rel (0) target = $region83
    $region82: #{neural_ode_decoder_forward.1} parent=1 // pred_region
      %485 = dma.done [#allocation3], 640
    $region83: #{neural_ode_decoder_forward.1} parent=1 // pred_fallthru
      _
    %486 = vsyncpa [#allocation3], 1
    %487 = vsyncpa [#allocation4], 1
    %488 = vsyncpa [#allocation6], 1
    %489 = vsyncpa [#allocation9], 1

</llo_original>
